<compile_context>
chip_gen: v7x
topology: tpu7x:2x2x1
jax: 0.10.0
libtpu: 0.0.40
codegen_flags: <defaults>
</compile_context>

<pallas_src>
import functools

import jax
import jax.numpy as jnp
from jax.experimental import pallas as pl
from jax.experimental.pallas import tpu as pltpu

_LANE = 128
_NEG_BIG = -1e30  # bias for padded action lanes -> exp() underflows to exactly 0


def actor_kernel(x_ref, w1_ref, b1_ref, w2_ref, b2_ref, w34_ref, b34_ref, out_ref):
    x = x_ref[...]                      # (TB, 4)  f32
    w1 = w1_ref[...]                    # (4, 64)  f32

    # Layer 1 on the VPU: K=4 would fill only 4 MXU rows, so do 4 broadcast FMAs.
    h1 = (x[:, 0:1] * w1[0:1, :]
          + x[:, 1:2] * w1[1:2, :]
          + x[:, 2:3] * w1[2:3, :]
          + x[:, 3:4] * w1[3:4, :]) + b1_ref[...]
    h1 = jnp.maximum(h1, 0.0)                               # (TB, 64)

    # Layer 2 on the MXU, f32 accumulation (weights may be bf16).
    h2 = jnp.dot(h1.astype(w2_ref.dtype), w2_ref[...],
                 preferred_element_type=jnp.float32) + b2_ref[...]
    h2 = jnp.maximum(h2, 0.0)                               # (TB, 256)

    # Folded layers 3+4: single (256, n_pad) matmul. Padded lanes get -1e30 bias.
    logits = jnp.dot(h2.astype(w34_ref.dtype), w34_ref[...],
                     preferred_element_type=jnp.float32) + b34_ref[...]

    # Max-subtracted softmax; padded lanes exp() to exactly 0, so normalization
    # over real lanes is exact. Reciprocal goes to the (otherwise idle) EUP slot.
    m = jnp.max(logits, axis=-1, keepdims=True)
    e = jnp.exp(logits - m)
    denom = jnp.sum(e, axis=-1, keepdims=True)
    out_ref[...] = e * pl.reciprocal(denom, approx=True)    # (TB, n_pad)


def prepare_actor_params(params, weight_dtype=jnp.float32):
    """Fold/pad/cast the weights ONCE (amortize per-call cost).

    Returns a dict of ARRAYS ONLY so it can be passed straight through jit
    (all shape information is recovered statically from the array shapes).
    weight_dtype: f32 for tiny per-env-step batches; bf16 for large-batch
    evaluation (bf16 MXU is native on v5e/v6e/v7x).
    """
    (w1, b1), (w2, b2), (w3, b3), (w4, b4) = params

    # Exact algebraic fold of the two unactivated linear layers (done in f32).
    w34 = w3 @ w4                       # (256, n_actions)
    b34 = b3 @ w4 + b4                  # (1, n_actions)

    # Pad the action dim to a multiple of 128 lanes (lane-dense output store).
    n_actions = w4.shape[1]
    n_pad = _LANE * pl.cdiv(n_actions, _LANE)
    pad = n_pad - n_actions
    w34 = jnp.pad(w34, ((0, 0), (0, pad)))
    b34 = jnp.pad(b34, ((0, 0), (0, pad)), constant_values=_NEG_BIG)

    return {
        "w1": w1.astype(jnp.float32), "b1": b1.astype(jnp.float32),
        "w2": w2.astype(weight_dtype), "b2": b2.astype(jnp.float32),
        "w34": w34.astype(weight_dtype), "b34": b34.astype(jnp.float32),
    }


def _choose_batch_tile(batch, tile_b_max):
    """Pick (TB, grid_b) with TB a multiple of 8 (sublane constraint).

    Single block whenever it fits one tile (removes per-step pipeline
    overhead); two even blocks up to 2*tile_b_max so "parallel" can shard
    across v7x's two TensorCores; tile_b_max-row blocks beyond that.
    ~4 KiB VMEM per row -> tile_b_max=1024 is ~4 MiB, well under the scoped
    VMEM limit on every generation (v7x physical VMEM is 64 MiB).
    """
    b8 = 8 * pl.cdiv(batch, 8)
    if b8 <= tile_b_max:
        return b8, 1
    if b8 <= 2 * tile_b_max:
        tb = 8 * pl.cdiv(b8, 16)        # two balanced blocks
        return tb, 2
    return tile_b_max, pl.cdiv(b8, tile_b_max)


@functools.partial(jax.jit, static_argnames=("tile_b_max",))
def actor_forward_padded(state, prep, *, tile_b_max=1024):
    """Whole MLP + softmax in one batch-tiled Pallas kernel.

    Returns the padded probability matrix (B_pad, n_pad): padded action lanes
    are exactly 0 probability, so a Categorical sampler / log_prob can consume
    it directly with no post-kernel slice. Padded batch rows (>= B) hold the
    softmax of a zero state — mask or ignore them downstream.
    """
    w1, b1 = prep["w1"], prep["b1"]
    w2, b2 = prep["w2"], prep["b2"]
    w34, b34 = prep["w34"], prep["b34"]
    n_pad = w34.shape[1]                 # static: padded action dim

    B = state.shape[0]
    TB, grid_b = _choose_batch_tile(B, tile_b_max)
    B_pad = grid_b * TB
    state_p = jnp.pad(state.astype(jnp.float32), ((0, B_pad - B), (0, 0)))

    def resident(shape):
        # Weights/biases: same full block every grid step -> stay VMEM-resident.
        return pl.BlockSpec(shape, lambda i: (0, 0))

    out = pl.pallas_call(
        actor_kernel,
        out_shape=jax.ShapeDtypeStruct((B_pad, n_pad), jnp.float32),
        grid=(grid_b,),
        in_specs=[
            pl.BlockSpec((TB, 4), lambda i: (i, 0)),     # state tile
            resident(w1.shape), resident(b1.shape),
            resident(w2.shape), resident(b2.shape),
            resident(w34.shape), resident(b34.shape),
        ],
        out_specs=pl.BlockSpec((TB, n_pad), lambda i: (i, 0)),
        compiler_params=pltpu.CompilerParams(
            dimension_semantics=("parallel",)),
    )(state_p, w1, b1, w2, b2, w34, b34)

    return out                                           # (B_pad, n_pad)


def actor_forward(state, prep, n_actions, *, tile_b_max=1024):
    """Convenience wrapper that slices back to (B, n_actions).

    Prefer actor_forward_padded for hot paths: this slice is an extra XLA copy
    that re-reads the padded output from HBM.
    """
    out = actor_forward_padded(state, prep, tile_b_max=tile_b_max)
    return out[:state.shape[0], :n_actions]


def init_params(key, n_actions):
    """Deterministic init mimicking PyTorch nn.Linear default (U[-1/sqrt(fan_in), ...])."""
    dims = [(4, 64), (64, 256), (256, 256), (256, n_actions)]
    params = []
    for (fan_in, fan_out) in dims:
        key, kw, kb = jax.random.split(key, 3)
        bound = 1.0 / (fan_in ** 0.5)
        w = jax.random.uniform(kw, (fan_in, fan_out), jnp.float32, -bound, bound)
        b = jax.random.uniform(kb, (1, fan_out), jnp.float32, -bound, bound)
        params.append((w, b))
    return params


def reference_forward(state, params):
    (w1, b1), (w2, b2), (w3, b3), (w4, b4) = params
    h = jnp.maximum(state @ w1 + b1, 0.0)
    h = jnp.maximum(h @ w2 + b2, 0.0)
    h = h @ w3 + b3
    logits = h @ w4 + b4
    return jax.nn.softmax(logits, axis=-1)


if __name__ == "__main__":
    key = jax.random.PRNGKey(0)
    k_params, k_s1, k_s2 = jax.random.split(key, 3)

    n_actions = 6
    params = init_params(k_params, n_actions)

    # --- f32 path, small per-env-step batch (single 8-row block, no waste) ---
    prep_f32 = prepare_actor_params(params, weight_dtype=jnp.float32)
    state_small = jax.random.normal(k_s1, (8, 4), jnp.float32)
    probs = jax.block_until_ready(actor_forward(state_small, prep_f32, n_actions))
    ref = reference_forward(state_small, params)
    assert probs.shape == (8, n_actions)
    assert jnp.allclose(jnp.sum(probs, axis=-1), 1.0, atol=2e-3)
    assert jnp.allclose(probs, ref, atol=2e-3, rtol=2e-3)

    # Padded-output path: padded action lanes must be exactly zero.
    probs_pad = jax.block_until_ready(actor_forward_padded(state_small, prep_f32))
    assert probs_pad.shape[1] == _LANE
    assert jnp.all(probs_pad[:, n_actions:] == 0.0)

    # --- bf16-weight path, larger batch, single block (B8=304 <= 1024) ---
    prep_bf16 = prepare_actor_params(params, weight_dtype=jnp.bfloat16)
    state_big = jax.random.normal(k_s2, (300, 4), jnp.float32)
    probs_bf16 = jax.block_until_ready(actor_forward(state_big, prep_bf16, n_actions))
    ref_big = reference_forward(state_big, params)
    assert probs_bf16.shape == (300, n_actions)
    assert jnp.allclose(jnp.sum(probs_bf16, axis=-1), 1.0, atol=2e-3)
    assert jnp.allclose(probs_bf16, ref_big, atol=3e-2)

    # --- multi-block grid path (force small tile cap to exercise 2 blocks) ---
    probs_mb = jax.block_until_ready(
        actor_forward(state_big, prep_f32, n_actions, tile_b_max=128))
    assert probs_mb.shape == (300, n_actions)
    assert jnp.allclose(probs_mb, ref_big, atol=2e-3, rtol=2e-3)

    # TODO(synk): torch.distributions.Categorical construction (sampling/log_prob)
    # is host-side glue, not kernel compute; the kernel returns its probability
    # matrix (padded lanes have exactly-zero probability and can never be sampled).
    print("KERNEL_OK")
</pallas_src>

<mosaic_0001>
module attributes {stable_mosaic.version = 11 : i64} {
  func.func @actor_kernel(%arg0: i32, %arg1: memref<8x4xf32, #tpu.memory_space<vmem>>, %arg2: memref<4x64xf32, #tpu.memory_space<vmem>>, %arg3: memref<1x64xf32, #tpu.memory_space<vmem>>, %arg4: memref<64x256xf32, #tpu.memory_space<vmem>>, %arg5: memref<1x256xf32, #tpu.memory_space<vmem>>, %arg6: memref<256x128xf32, #tpu.memory_space<vmem>>, %arg7: memref<1x128xf32, #tpu.memory_space<vmem>>, %arg8: memref<8x128xf32, #tpu.memory_space<vmem>>) attributes {dimension_semantics = [#tpu.dimension_semantics<parallel>], iteration_bounds = array<i64: 1>, scalar_prefetch = 0 : i64, scratch_operands = 0 : i64, tpu.core_type = #tpu.core_type<tc>, window_params = [{transform_indices = @transform_0, window_bounds = array<i64: 8, 4>}, {pipeline_mode = #tpu.pipeline_mode<synchronous>, transform_indices = @transform_1, window_bounds = array<i64: 4, 64>}, {pipeline_mode = #tpu.pipeline_mode<synchronous>, transform_indices = @transform_2, window_bounds = array<i64: 1, 64>}, {pipeline_mode = #tpu.pipeline_mode<synchronous>, transform_indices = @transform_3, window_bounds = array<i64: 64, 256>}, {pipeline_mode = #tpu.pipeline_mode<synchronous>, transform_indices = @transform_4, window_bounds = array<i64: 1, 256>}, {pipeline_mode = #tpu.pipeline_mode<synchronous>, transform_indices = @transform_5, window_bounds = array<i64: 256, 128>}, {pipeline_mode = #tpu.pipeline_mode<synchronous>, transform_indices = @transform_6, window_bounds = array<i64: 1, 128>}, {transform_indices = @transform_7, window_bounds = array<i64: 8, 128>}]} {
    %c0 = arith.constant 0 : index
    %c0_0 = arith.constant 0 : index
    %0 = vector.load %arg1[%c0, %c0_0] : memref<8x4xf32, #tpu.memory_space<vmem>>, vector<8x4xf32>
    %c0_1 = arith.constant 0 : index
    %c0_2 = arith.constant 0 : index
    %1 = vector.load %arg2[%c0_1, %c0_2] : memref<4x64xf32, #tpu.memory_space<vmem>>, vector<4x64xf32>
    %2 = vector.extract_strided_slice %0 {offsets = [0, 0], sizes = [8, 1], strides = [1, 1]} : vector<8x4xf32> to vector<8x1xf32>
    %3 = vector.extract_strided_slice %1 {offsets = [0, 0], sizes = [1, 64], strides = [1, 1]} : vector<4x64xf32> to vector<1x64xf32>
    %4 = vector.broadcast %2 : vector<8x1xf32> to vector<8x64xf32>
    %5 = vector.broadcast %3 : vector<1x64xf32> to vector<8x64xf32>
    %6 = arith.mulf %4, %5 : vector<8x64xf32>
    %7 = vector.extract_strided_slice %0 {offsets = [0, 1], sizes = [8, 1], strides = [1, 1]} : vector<8x4xf32> to vector<8x1xf32>
    %8 = vector.extract_strided_slice %1 {offsets = [1, 0], sizes = [1, 64], strides = [1, 1]} : vector<4x64xf32> to vector<1x64xf32>
    %9 = vector.broadcast %7 : vector<8x1xf32> to vector<8x64xf32>
    %10 = vector.broadcast %8 : vector<1x64xf32> to vector<8x64xf32>
    %11 = arith.mulf %9, %10 : vector<8x64xf32>
    %12 = arith.addf %6, %11 : vector<8x64xf32>
    %13 = vector.extract_strided_slice %0 {offsets = [0, 2], sizes = [8, 1], strides = [1, 1]} : vector<8x4xf32> to vector<8x1xf32>
    %14 = vector.extract_strided_slice %1 {offsets = [2, 0], sizes = [1, 64], strides = [1, 1]} : vector<4x64xf32> to vector<1x64xf32>
    %15 = vector.broadcast %13 : vector<8x1xf32> to vector<8x64xf32>
    %16 = vector.broadcast %14 : vector<1x64xf32> to vector<8x64xf32>
    %17 = arith.mulf %15, %16 : vector<8x64xf32>
    %18 = arith.addf %12, %17 : vector<8x64xf32>
    %19 = vector.extract_strided_slice %0 {offsets = [0, 3], sizes = [8, 1], strides = [1, 1]} : vector<8x4xf32> to vector<8x1xf32>
    %20 = vector.extract_strided_slice %1 {offsets = [3, 0], sizes = [1, 64], strides = [1, 1]} : vector<4x64xf32> to vector<1x64xf32>
    %21 = vector.broadcast %19 : vector<8x1xf32> to vector<8x64xf32>
    %22 = vector.broadcast %20 : vector<1x64xf32> to vector<8x64xf32>
    %23 = arith.mulf %21, %22 : vector<8x64xf32>
    %24 = arith.addf %18, %23 : vector<8x64xf32>
    %c0_3 = arith.constant 0 : index
    %c0_4 = arith.constant 0 : index
    %25 = vector.load %arg3[%c0_3, %c0_4] : memref<1x64xf32, #tpu.memory_space<vmem>>, vector<1x64xf32>
    %26 = vector.broadcast %25 : vector<1x64xf32> to vector<8x64xf32>
    %27 = arith.addf %24, %26 : vector<8x64xf32>
    %cst = arith.constant 0.000000e+00 : f32
    %28 = vector.broadcast %cst : f32 to vector<8x64xf32>
    %29 = arith.maximumf %27, %28 : vector<8x64xf32>
    %c0_5 = arith.constant 0 : index
    %c0_6 = arith.constant 0 : index
    %30 = vector.load %arg4[%c0_5, %c0_6] : memref<64x256xf32, #tpu.memory_space<vmem>>, vector<64x256xf32>
    %cst_7 = arith.constant dense<0.000000e+00> : vector<8x256xf32>
    %31 = tpu.matmul %29, %30, %cst_7 {dimension_numbers = #tpu.dot_dimension_numbers<[1], [0], [0], [1], [0, 0, 1, 1], [], []>} : vector<8x64xf32>, vector<64x256xf32>, vector<8x256xf32> -> vector<8x256xf32>
    %c0_8 = arith.constant 0 : index
    %c0_9 = arith.constant 0 : index
    %32 = vector.load %arg5[%c0_8, %c0_9] : memref<1x256xf32, #tpu.memory_space<vmem>>, vector<1x256xf32>
    %33 = vector.broadcast %32 : vector<1x256xf32> to vector<8x256xf32>
    %34 = arith.addf %31, %33 : vector<8x256xf32>
    %cst_10 = arith.constant 0.000000e+00 : f32
    %35 = vector.broadcast %cst_10 : f32 to vector<8x256xf32>
    %36 = arith.maximumf %34, %35 : vector<8x256xf32>
    %c0_11 = arith.constant 0 : index
    %c0_12 = arith.constant 0 : index
    %37 = vector.load %arg6[%c0_11, %c0_12] : memref<256x128xf32, #tpu.memory_space<vmem>>, vector<256x128xf32>
    %cst_13 = arith.constant dense<0.000000e+00> : vector<8x128xf32>
    %38 = tpu.matmul %36, %37, %cst_13 {dimension_numbers = #tpu.dot_dimension_numbers<[1], [0], [0], [1], [0, 0, 1, 1], [], []>} : vector<8x256xf32>, vector<256x128xf32>, vector<8x128xf32> -> vector<8x128xf32>
    %c0_14 = arith.constant 0 : index
    %c0_15 = arith.constant 0 : index
    %39 = vector.load %arg7[%c0_14, %c0_15] : memref<1x128xf32, #tpu.memory_space<vmem>>, vector<1x128xf32>
    %40 = vector.broadcast %39 : vector<1x128xf32> to vector<8x128xf32>
    %41 = arith.addf %38, %40 : vector<8x128xf32>
    %cst_16 = arith.constant dense<0xFF800000> : vector<8xf32>
    %42 = vector.multi_reduction <maximumf>, %41, %cst_16 [1] : vector<8x128xf32> to vector<8xf32>
    %43 = vector.shape_cast %42 : vector<8xf32> to vector<8x1xf32>
    %44 = vector.broadcast %43 : vector<8x1xf32> to vector<8x128xf32>
    %45 = arith.subf %41, %44 : vector<8x128xf32>
    %46 = math.exp %45 : vector<8x128xf32>
    %cst_17 = arith.constant dense<0.000000e+00> : vector<8xf32>
    %47 = vector.multi_reduction <add>, %46, %cst_17 [1] : vector<8x128xf32> to vector<8xf32>
    %48 = vector.shape_cast %47 : vector<8xf32> to vector<8x1xf32>
    %49 = tpu.reciprocal %48 {approx = true} : vector<8x1xf32> -> vector<8x1xf32>
    %50 = vector.broadcast %49 : vector<8x1xf32> to vector<8x128xf32>
    %51 = arith.mulf %46, %50 : vector<8x128xf32>
    %c0_18 = arith.constant 0 : index
    %c0_19 = arith.constant 0 : index
    %52 = vector.load %arg8[%c0_18, %c0_19] : memref<8x128xf32, #tpu.memory_space<vmem>>, vector<8x128xf32>
    tpu.vector_store %arg8[%c0_18, %c0_19], %51 {strides = array<i32>} : memref<8x128xf32, #tpu.memory_space<vmem>>, vector<8x128xf32>,
    return
  }
  func.func @transform_0(%arg0: i32) -> (i32, i32) {
    %c0_i32 = arith.constant 0 : i32
    %c0_i32_0 = arith.constant 0 : i32
    return %arg0, %c0_i32 : i32, i32
  }
  func.func @transform_1(%arg0: i32) -> (i32, i32) {
    %c0_i32 = arith.constant 0 : i32
    %c0_i32_0 = arith.constant 0 : i32
    %c0_i32_1 = arith.constant 0 : i32
    return %c0_i32, %c0_i32_0 : i32, i32
  }
  func.func @transform_2(%arg0: i32) -> (i32, i32) {
    %c0_i32 = arith.constant 0 : i32
    %c0_i32_0 = arith.constant 0 : i32
    %c0_i32_1 = arith.constant 0 : i32
    return %c0_i32, %c0_i32_0 : i32, i32
  }
  func.func @transform_3(%arg0: i32) -> (i32, i32) {
    %c0_i32 = arith.constant 0 : i32
    %c0_i32_0 = arith.constant 0 : i32
    %c0_i32_1 = arith.constant 0 : i32
    return %c0_i32, %c0_i32_0 : i32, i32
  }
  func.func @transform_4(%arg0: i32) -> (i32, i32) {
    %c0_i32 = arith.constant 0 : i32
    %c0_i32_0 = arith.constant 0 : i32
    %c0_i32_1 = arith.constant 0 : i32
    return %c0_i32, %c0_i32_0 : i32, i32
  }
  func.func @transform_5(%arg0: i32) -> (i32, i32) {
    %c0_i32 = arith.constant 0 : i32
    %c0_i32_0 = arith.constant 0 : i32
    %c0_i32_1 = arith.constant 0 : i32
    return %c0_i32, %c0_i32_0 : i32, i32
  }
  func.func @transform_6(%arg0: i32) -> (i32, i32) {
    %c0_i32 = arith.constant 0 : i32
    %c0_i32_0 = arith.constant 0 : i32
    %c0_i32_1 = arith.constant 0 : i32
    return %c0_i32, %c0_i32_0 : i32, i32
  }
  func.func @transform_7(%arg0: i32) -> (i32, i32) {
    %c0_i32 = arith.constant 0 : i32
    %c0_i32_0 = arith.constant 0 : i32
    return %arg0, %c0_i32 : i32, i32
  }
}

</mosaic_0001>

<llo_original>
// kernel: actor_forward_padded.1
$region0: #{actor_forward_padded.1}
  #allocation0 [shape = 'u32[]', space=smem, size = 0x4, offset = 0x4, fixed_abs, tag = 'smem constant byte address 0x4 - core index']
  #allocation1 [shape = 'u32[144,128]{1,0:T(1,128)}', space=vmem, size = 0x12000, scoped, tag = 'internal scratch']
  %s0 = inlined_call_operand.vmem [shape: f32[8,4], index: 0, kind: input, shape index: {}]
  %s1 = inlined_call_operand.vmem [shape: f32[4,64], index: 1, kind: input, shape index: {}]
  %s2 = inlined_call_operand.vmem [shape: f32[1,64], index: 2, kind: input, shape index: {}]
  %s3 = inlined_call_operand.hbm [shape: f32[64,256], index: 3, kind: input, shape index: {}]
  %s4 = inlined_call_operand.vmem [shape: f32[1,256], index: 4, kind: input, shape index: {}]
  %s5 = inlined_call_operand.hbm [shape: f32[256,128], index: 5, kind: input, shape index: {}]
  %s6 = inlined_call_operand.vmem [shape: f32[1,128], index: 6, kind: input, shape index: {}]
  %s7 = inlined_call_operand.hbm [shape: f32[8,128], index: 7, kind: output, shape index: {}]
  %s8 = sld [smem:[#allocation0]]
  $region46: #{actor_forward_padded.1} parent=0
    _
  %s10 = ssub.s32 1, %s8
  %s11 = scalar_select 0, %s10, %s8
  $region1: #{actor_forward_padded.1} parent=0
    #allocation2 [shape = 'u8[65536]{0}', space=vmem, size = 0x10000, scoped, tag = 'input window, operand 3, single buffered']
    #allocation3 [shape = 's32[1]{0}', space=sflag, size = 0x4, scoped, tag = 'scoped memory for actor_forward_padded.1']
    #allocation4 [shape = 's32[1]{0}', space=sflag, size = 0x4, scoped, tag = 'scoped memory for actor_forward_padded.1']
    #allocation5 [shape = 'u8[131072]{0}', space=vmem, size = 0x20000, scoped, tag = 'input window, operand 5, single buffered']
    #allocation6 [shape = 's32[1]{0}', space=sflag, size = 0x4, scoped, tag = 'scoped memory for actor_forward_padded.1']
    #allocation7 [shape = 'u8[4096]{0}', space=vmem, size = 0x1000, scoped, tag = 'output window, operand 0, single buffered']
    %12 = vsyncpa [#allocation3], 0
    %13 = vsyncpa [#allocation6], 0
    %14 = vsyncpa [#allocation4], 0
    // Predicated region
    $region2: #{actor_forward_padded.1} parent=1 // pred_check
      _
    $region3: #{actor_forward_padded.1} parent=1 // pred_check_branch
      %16 = sbr.rel (0) target = $region5
    $region4: #{actor_forward_padded.1} parent=1 // pred_region
      _
    $region5: #{actor_forward_padded.1} parent=1 // pred_fallthru
      _
    // Predicated region
    $region6: #{actor_forward_padded.1} parent=1 // pred_check
      _
    $region7: #{actor_forward_padded.1} parent=1 // pred_check_branch
      %18 = sbr.rel (0) target = $region9
    $region8: #{actor_forward_padded.1} parent=1 // pred_region
      _
    $region9: #{actor_forward_padded.1} parent=1 // pred_fallthru
      _
    // Predicated region
    $region10: #{actor_forward_padded.1} parent=1 // pred_check
      _
    $region11: #{actor_forward_padded.1} parent=1 // pred_check_branch
      %20 = sbr.rel (0) target = $region13
    $region12: #{actor_forward_padded.1} parent=1 // pred_region
      _
    $region13: #{actor_forward_padded.1} parent=1 // pred_fallthru
      _
    // Predicated region
    $region14: #{actor_forward_padded.1} parent=1 // pred_check
      _
    $region15: #{actor_forward_padded.1} parent=1 // pred_check_branch
      %22 = sbr.rel (0) target = $region17
    $region16: #{actor_forward_padded.1} parent=1 // pred_region
      %s24 = ssub.s32 2048, 2048
      %25 = vsyncadd [#allocation3], %s24
      %s26 = sshll.u32 [#allocation2], 4
      %s27 = int_to_ptr.vmem [resolvable:$true] %s26
      %32 = dma.hbm_to_vmem [thread:$0]  %s3, 2048, %s27, [#allocation3], 256, 256, 16
    $region17: #{actor_forward_padded.1} parent=1 // pred_fallthru
      _
    // Predicated region
    $region18: #{actor_forward_padded.1} parent=1 // pred_check
      _
    $region19: #{actor_forward_padded.1} parent=1 // pred_check_branch
      %34 = sbr.rel (0) target = $region21
    $region20: #{actor_forward_padded.1} parent=1 // pred_region
      _
    $region21: #{actor_forward_padded.1} parent=1 // pred_fallthru
      _
    // Predicated region
    $region22: #{actor_forward_padded.1} parent=1 // pred_check
      _
    $region23: #{actor_forward_padded.1} parent=1 // pred_check_branch
      %36 = sbr.rel (0) target = $region25
    $region24: #{actor_forward_padded.1} parent=1 // pred_region
      %s38 = ssub.s32 4096, 4096
      %39 = vsyncadd [#allocation6], %s38
      %s40 = sshll.u32 [#allocation5], 4
      %s41 = int_to_ptr.vmem [resolvable:$true] %s40
      %46 = dma.hbm_to_vmem [thread:$0]  %s5, 4096, %s41, [#allocation6], 128, 128, 8
    $region25: #{actor_forward_padded.1} parent=1 // pred_fallthru
      _
    // Predicated region
    $region26: #{actor_forward_padded.1} parent=1 // pred_check
      _
    $region27: #{actor_forward_padded.1} parent=1 // pred_check_branch
      %48 = sbr.rel (0) target = $region29
    $region28: #{actor_forward_padded.1} parent=1 // pred_region
      _
    $region29: #{actor_forward_padded.1} parent=1 // pred_fallthru
      _
    // Predicated region
    $region30: #{actor_forward_padded.1} parent=1 // pred_check
      _
    $region31: #{actor_forward_padded.1} parent=1 // pred_check_branch
      %50 = sbr.rel (0) target = $region33
    $region32: #{actor_forward_padded.1} parent=1 // pred_region
      %51 = dma.done [#allocation3], 2048
    $region33: #{actor_forward_padded.1} parent=1 // pred_fallthru
      _
    // Predicated region
    $region34: #{actor_forward_padded.1} parent=1 // pred_check
      _
    $region35: #{actor_forward_padded.1} parent=1 // pred_check_branch
      %53 = sbr.rel (0) target = $region37
    $region36: #{actor_forward_padded.1} parent=1 // pred_region
      %54 = dma.done [#allocation6], 4096
    $region37: #{actor_forward_padded.1} parent=1 // pred_fallthru
      _
    %v55 = vld [vmem:[%s0] sm:$0xff]
    %v56 = vld [vmem:[%s1] sm:$0xf]
    %58 = vset.pattern.permute.xlu0 0
    %59 = vperm.xlu0 %58, %v55
    %v60 = vpop.permute.xlu0 %59
    %v62 = vlaneseq
    %v63 = vshrl.u32 %v62, 7
    %v64 = vsub.s32 0, %v63
    %v65 = vrot.slane %v56, %v64
    %v66 = vmul.f32 %v60, %v65
    %67 = vset.pattern.permute.xlu0 1
    %68 = vperm.xlu0 %67, %v55
    %v69 = vpop.permute.xlu0 %68
    %v71 = vlaneseq
    %v72 = vshrl.u32 %v71, 7
    %v73 = vsub.s32 1, %v72
    %v74 = vrot.slane %v56, %v73
    %v75 = vmul.f32 %v69, %v74
    %v76 = vadd.f32 %v66, %v75
    %77 = vset.pattern.permute.xlu0 2
    %78 = vperm.xlu0 %77, %v55
    %v79 = vpop.permute.xlu0 %78
    %v81 = vlaneseq
    %v82 = vshrl.u32 %v81, 7
    %v83 = vsub.s32 2, %v82
    %v84 = vrot.slane %v56, %v83
    %v85 = vmul.f32 %v79, %v84
    %v86 = vadd.f32 %v76, %v85
    %87 = vset.pattern.permute.xlu0 3
    %88 = vperm.xlu0 %87, %v55
    %v89 = vpop.permute.xlu0 %88
    %v91 = vlaneseq
    %v92 = vshrl.u32 %v91, 7
    %v93 = vsub.s32 3, %v92
    %v94 = vrot.slane %v56, %v93
    %v95 = vmul.f32 %v89, %v94
    %v96 = vadd.f32 %v86, %v95
    %v97 = vld [vmem:[%s2] sm:$0x1]
    %v99 = vlaneseq
    %v100 = vshrl.u32 %v99, 7
    %v101 = vsub.s32 0, %v100
    %v102 = vrot.slane %v97, %v101
    %v104 = vadd.f32 %v96, %v102
    %v105 = vmax.f32 %v104, 0.0
    %v106 = vld [vmem:[#allocation2] sm:$0xff]
    %v107 = vld [vmem:[#allocation2 + $0x8] sm:$0xff]
    %v108 = vld [vmem:[#allocation2 + $0x10] sm:$0xff]
    %v109 = vld [vmem:[#allocation2 + $0x18] sm:$0xff]
    %v110 = vld [vmem:[#allocation2 + $0x20] sm:$0xff]
    %v111 = vld [vmem:[#allocation2 + $0x28] sm:$0xff]
    %v112 = vld [vmem:[#allocation2 + $0x30] sm:$0xff]
    %v113 = vld [vmem:[#allocation2 + $0x38] sm:$0xff]
    %v114 = vld [vmem:[#allocation2 + $0x40] sm:$0xff]
    %v115 = vld [vmem:[#allocation2 + $0x48] sm:$0xff]
    %v116 = vld [vmem:[#allocation2 + $0x50] sm:$0xff]
    %v117 = vld [vmem:[#allocation2 + $0x58] sm:$0xff]
    %v118 = vld [vmem:[#allocation2 + $0x60] sm:$0xff]
    %v119 = vld [vmem:[#allocation2 + $0x68] sm:$0xff]
    %v120 = vld [vmem:[#allocation2 + $0x70] sm:$0xff]
    %v121 = vld [vmem:[#allocation2 + $0x78] sm:$0xff]
    %v122 = vld [vmem:[%s4] sm:$0x3]
    %v124 = vlaneseq
    %v125 = vshrl.u32 %v124, 7
    %v126 = vsub.s32 0, %v125
    %v127 = vrot.slane %v122, %v126
    %v128 = vlaneseq
    %v129 = vshrl.u32 %v128, 7
    %v130 = vsub.s32 1, %v129
    %v131 = vrot.slane %v122, %v130
    %vm134 = vcmask 523264
    %v136 = vsel %vm134, %v105, 0
    %138 = vmatprep.subr.mxu0 %v107
    %139 = vmatpush1.msra.mxu0 %v106
    %140 = vmatprep.subr.mxu0 %v109
    %141 = vmatpush1.msra.mxu0 %v108
    %142 = vmatprep.subr.mxu0 %v111
    %143 = vmatpush1.msra.mxu0 %v110
    %144 = vmatprep.subr.mxu0 %v113
    %145 = vmatpush1.msra.mxu0 %v112
    %146 = vmatprep.subr.mxu0 %v115
    %147 = vmatpush1.msra.mxu0 %v114
    %148 = vmatprep.subr.mxu0 %v117
    %149 = vmatpush1.msra.mxu0 %v116
    %150 = vmatprep.subr.mxu0 %v119
    %151 = vmatpush1.msra.mxu0 %v118
    %152 = vmatprep.subr.mxu0 %v121
    %153 = vmatpush1.msra.mxu0 %v120
    %154 = vmatprep.subr.mxu0 0.0
    %155 = vmatpush1.msra.mxu0 0.0
    %156 = vmatprep.subr.mxu0 0.0
    %157 = vmatpush1.msra.mxu0 0.0
    %158 = vmatprep.subr.mxu0 0.0
    %159 = vmatpush1.msra.mxu0 0.0
    %160 = vmatprep.subr.mxu0 0.0
    %161 = vmatpush1.msra.mxu0 0.0
    %162 = vmatprep.subr.mxu0 0.0
    %163 = vmatpush1.msra.mxu0 0.0
    %164 = vmatprep.subr.mxu0 0.0
    %165 = vmatpush1.msra.mxu0 0.0
    %166 = vmatprep.subr.mxu0 0.0
    %167 = vmatpush1.msra.mxu0 0.0
    %168 = vmatprep.subr.mxu0 0.0
    %169 = vmatpush1.msra.mxu0 0.0
    %170 = vmatprep.subr.mxu0 0.0
    %171 = vmatpush1.msra.mxu0 0.0
    %172 = vmatprep.subr.mxu0 0.0
    %173 = vmatpush1.msra.mxu0 0.0
    %174 = vmatprep.subr.mxu0 0.0
    %175 = vmatpush1.msra.mxu0 0.0
    %176 = vmatprep.subr.mxu0 0.0
    %177 = vmatpush1.msra.mxu0 0.0
    %178 = vmatprep.subr.mxu0 0.0
    %179 = vmatpush1.msra.mxu0 0.0
    %180 = vmatprep.subr.mxu0 0.0
    %181 = vmatpush1.msra.mxu0 0.0
    %182 = vmatprep.subr.mxu0 0.0
    %183 = vmatpush1.msra.mxu0 0.0
    %184 = vmatprep.subr.mxu0 0.0
    %185 = vmatpush1.msra.mxu0 0.0
    %186 = vmatprep.subr.mxu0 0.0
    %187 = vmatpush1.msra.mxu0 0.0
    %188 = vmatprep.subr.mxu0 0.0
    %189 = vmatpush1.msra.mxu0 0.0
    %190 = vmatprep.subr.mxu0 0.0
    %191 = vmatpush1.msra.mxu0 0.0
    %192 = vmatprep.subr.mxu0 0.0
    %193 = vmatpush1.msra.mxu0 0.0
    %194 = vmatprep.subr.mxu0 0.0
    %195 = vmatpush1.msra.mxu0 0.0
    %196 = vmatprep.subr.mxu0 0.0
    %197 = vmatpush1.msra.mxu0 0.0
    %198 = vmatprep.subr.mxu0 0.0
    %199 = vmatpush1.msra.mxu0 0.0
    %200 = vmatprep.subr.mxu0 0.0
    %201 = vmatpush1.msra.mxu0 0.0
    %202 = vmatprep.mubr.f32.mxu0 0.0
    %203 = vmatmul.mubr.f32.gmra.mrb[0].mxu0 %v136
    %v204 = vpop.f32.mrb[0].mxu0
    %v205 = vadd.f32 %v127, %v204
    %v206 = vpop.f32.mrb[0].mxu0
    %v207 = vadd.f32 %v131, %v206
    %208 = vdwg.mxu0
    %v209 = vmax.f32 %v205, 0.0
    %v210 = vmax.f32 %v207, 0.0
    %v211 = vld [vmem:[#allocation5] sm:$0xff]
    %v212 = vld [vmem:[#allocation5 + $0x8] sm:$0xff]
    %v213 = vld [vmem:[#allocation5 + $0x10] sm:$0xff]
    %v214 = vld [vmem:[#allocation5 + $0x18] sm:$0xff]
    %v215 = vld [vmem:[#allocation5 + $0x20] sm:$0xff]
    %v216 = vld [vmem:[#allocation5 + $0x28] sm:$0xff]
    %v217 = vld [vmem:[#allocation5 + $0x30] sm:$0xff]
    %v218 = vld [vmem:[#allocation5 + $0x38] sm:$0xff]
    %v219 = vld [vmem:[#allocation5 + $0x40] sm:$0xff]
    %v220 = vld [vmem:[#allocation5 + $0x48] sm:$0xff]
    %v221 = vld [vmem:[#allocation5 + $0x50] sm:$0xff]
    %v222 = vld [vmem:[#allocation5 + $0x58] sm:$0xff]
    %v223 = vld [vmem:[#allocation5 + $0x60] sm:$0xff]
    %v224 = vld [vmem:[#allocation5 + $0x68] sm:$0xff]
    %v225 = vld [vmem:[#allocation5 + $0x70] sm:$0xff]
    %v226 = vld [vmem:[#allocation5 + $0x78] sm:$0xff]
    %v227 = vld [vmem:[#allocation5 + $0x80] sm:$0xff]
    %v228 = vld [vmem:[#allocation5 + $0x88] sm:$0xff]
    %v229 = vld [vmem:[#allocation5 + $0x90] sm:$0xff]
    %v230 = vld [vmem:[#allocation5 + $0x98] sm:$0xff]
    %v231 = vld [vmem:[#allocation5 + $0xa0] sm:$0xff]
    %v232 = vld [vmem:[#allocation5 + $0xa8] sm:$0xff]
    %v233 = vld [vmem:[#allocation5 + $0xb0] sm:$0xff]
    %v234 = vld [vmem:[#allocation5 + $0xb8] sm:$0xff]
    %v235 = vld [vmem:[#allocation5 + $0xc0] sm:$0xff]
    %v236 = vld [vmem:[#allocation5 + $0xc8] sm:$0xff]
    %v237 = vld [vmem:[#allocation5 + $0xd0] sm:$0xff]
    %v238 = vld [vmem:[#allocation5 + $0xd8] sm:$0xff]
    %v239 = vld [vmem:[#allocation5 + $0xe0] sm:$0xff]
    %v240 = vld [vmem:[#allocation5 + $0xe8] sm:$0xff]
    %v241 = vld [vmem:[#allocation5 + $0xf0] sm:$0xff]
    %v242 = vld [vmem:[#allocation5 + $0xf8] sm:$0xff]
    %v243 = vld [vmem:[%s6] sm:$0x1]
    %v245 = vlaneseq
    %v246 = vshrl.u32 %v245, 7
    %v247 = vsub.s32 0, %v246
    %v248 = vrot.slane %v243, %v247
    %250 = vmatprep.subr.mxu0 0.0
    %251 = vmatpush1.msra.mxu0 %v211
    %252 = vmatprep.subr.mxu0 0.0
    %253 = vmatpush1.msra.mxu0 %v212
    %254 = vmatprep.subr.mxu0 0.0
    %255 = vmatpush1.msra.mxu0 %v213
    %256 = vmatprep.subr.mxu0 0.0
    %257 = vmatpush1.msra.mxu0 %v214
    %258 = vmatprep.subr.mxu0 0.0
    %259 = vmatpush1.msra.mxu0 %v215
    %260 = vmatprep.subr.mxu0 0.0
    %261 = vmatpush1.msra.mxu0 %v216
    %262 = vmatprep.subr.mxu0 0.0
    %263 = vmatpush1.msra.mxu0 %v217
    %264 = vmatprep.subr.mxu0 0.0
    %265 = vmatpush1.msra.mxu0 %v218
    %266 = vmatprep.subr.mxu0 0.0
    %267 = vmatpush1.msra.mxu0 %v219
    %268 = vmatprep.subr.mxu0 0.0
    %269 = vmatpush1.msra.mxu0 %v220
    %270 = vmatprep.subr.mxu0 0.0
    %271 = vmatpush1.msra.mxu0 %v221
    %272 = vmatprep.subr.mxu0 0.0
    %273 = vmatpush1.msra.mxu0 %v222
    %274 = vmatprep.subr.mxu0 0.0
    %275 = vmatpush1.msra.mxu0 %v223
    %276 = vmatprep.subr.mxu0 0.0
    %277 = vmatpush1.msra.mxu0 %v224
    %278 = vmatprep.subr.mxu0 0.0
    %279 = vmatpush1.msra.mxu0 %v225
    %280 = vmatprep.subr.mxu0 0.0
    %281 = vmatpush1.msra.mxu0 %v226
    %282 = vmatprep.subr.mxu0 0.0
    %283 = vmatpush1.msra.mxu0 %v227
    %284 = vmatprep.subr.mxu0 0.0
    %285 = vmatpush1.msra.mxu0 %v228
    %286 = vmatprep.subr.mxu0 0.0
    %287 = vmatpush1.msra.mxu0 %v229
    %288 = vmatprep.subr.mxu0 0.0
    %289 = vmatpush1.msra.mxu0 %v230
    %290 = vmatprep.subr.mxu0 0.0
    %291 = vmatpush1.msra.mxu0 %v231
    %292 = vmatprep.subr.mxu0 0.0
    %293 = vmatpush1.msra.mxu0 %v232
    %294 = vmatprep.subr.mxu0 0.0
    %295 = vmatpush1.msra.mxu0 %v233
    %296 = vmatprep.subr.mxu0 0.0
    %297 = vmatpush1.msra.mxu0 %v234
    %298 = vmatprep.subr.mxu0 0.0
    %299 = vmatpush1.msra.mxu0 %v235
    %300 = vmatprep.subr.mxu0 0.0
    %301 = vmatpush1.msra.mxu0 %v236
    %302 = vmatprep.subr.mxu0 0.0
    %303 = vmatpush1.msra.mxu0 %v237
    %304 = vmatprep.subr.mxu0 0.0
    %305 = vmatpush1.msra.mxu0 %v238
    %306 = vmatprep.subr.mxu0 0.0
    %307 = vmatpush1.msra.mxu0 %v239
    %308 = vmatprep.subr.mxu0 0.0
    %309 = vmatpush1.msra.mxu0 %v240
    %310 = vmatprep.subr.mxu0 0.0
    %311 = vmatpush1.msra.mxu0 %v241
    %312 = vmatprep.subr.mxu0 0.0
    %313 = vmatpush1.msra.mxu0 %v242
    %314 = vmatprep.mubr.f32.mxu0 %v210
    %315 = vmatmul.mubr.f32.gmra.mrb[0].mxu0 %v209
    %v316 = vpop.f32.mrb[0].mxu0
    %v317 = vadd.f32 %v248, %v316
    %v318 = vpop.f32.mrb[0].mxu0
    %319 = vdwg.mxu0
    %320 = vmax.xlane.f32.xlu0 %v317
    %v321 = vpop.xlane.xlu0 %320
    %v322 = vsub.f32 %v317, %v321
    %v323 = vmul.f32 %v322, 1.442695
    %v324 = vpow.pop %v323
    %325 = vadd.xlane.f32.xlu0 %v324
    %v326 = vpop.xlane.xlu0 %325
    %v327 = vrcp.pop %v326
    %v328 = vmul.f32 %v324, %v327
    %329 = vst [vmem:[#allocation7] sm:$0xff] %v328
    // Predicated region
    $region38: #{actor_forward_padded.1} parent=1 // pred_check
      _
    $region39: #{actor_forward_padded.1} parent=1 // pred_check_branch
      %331 = sbr.rel (0) target = $region41
    $region40: #{actor_forward_padded.1} parent=1 // pred_region
      %s333 = ssub.s32 128, 128
      %334 = vsyncadd [#allocation4], %s333
      %s336 = sshll.u32 [#allocation7], 4
      %s337 = int_to_ptr.vmem [resolvable:$true] %s336
      %339 = dma.vmem_to_hbm [thread:$0]  %s337, 128, %s7, [#allocation4]
    $region41: #{actor_forward_padded.1} parent=1 // pred_fallthru
      _
    // Predicated region
    $region42: #{actor_forward_padded.1} parent=1 // pred_check
      _
    $region43: #{actor_forward_padded.1} parent=1 // pred_check_branch
      %341 = sbr.rel (0) target = $region45
    $region44: #{actor_forward_padded.1} parent=1 // pred_region
      %342 = dma.done [#allocation4], 128
    $region45: #{actor_forward_padded.1} parent=1 // pred_fallthru
      _
    %343 = vsyncpa [#allocation3], 1
    %344 = vsyncpa [#allocation6], 1
    %345 = vsyncpa [#allocation4], 1

</llo_original>
